<compile_context>
chip_gen: v7x
topology: tpu7x:2x2x1
jax: 0.10.0
libtpu: 0.0.40
codegen_flags: <defaults>
</compile_context>

<pallas_src>
import jax
import jax.numpy as jnp
from jax.experimental import pallas as pl
from jax.experimental.pallas import tpu as pltpu


def _fused_kernel(frames_ref, fk_ref, fn_ref, fkn_ref, d_ref,
                  w1_ref, b1_ref, w2_ref, b2_ref, o_ref):
    # Activations are channel-major: (C, tm); lanes = flattened spatial.
    frames = frames_ref[...]       # (6, tm) two RGB frames (input dtype)
    fk     = fk_ref[...]           # (2, tm)
    fn     = fn_ref[...]           # (2, tm)
    fkn    = fkn_ref[...]          # (2, tm)
    d      = d_ref[...]            # (1, tm) disparity

    tm = frames.shape[1]

    # Assemble one (16, tm) activation block in VMEM (13 real channels,
    # zero-padded to 16) so layer 1 is a single fused MXU matmul instead of
    # five skinny K in {1,2,6} dots.
    pad = jnp.zeros((3, tm), frames.dtype)
    x = jnp.concatenate([frames, fk, fn, fkn, d, pad],
                        axis=0).astype(jnp.bfloat16)          # (16, tm)

    # Layer 1: fused 1x1 conv (channel mix), bf16 operands, f32 accumulation.
    h = jnp.dot(w1_ref[...], x, preferred_element_type=jnp.float32)  # (hid, tm)
    h = jnp.maximum(h + b1_ref[...], 0.0)                     # bias lane-broadcast

    # Layer 2: 1x1 conv -> 3-channel residual, (cout, tm).
    y = jnp.dot(w2_ref[...], h.astype(jnp.bfloat16),
                preferred_element_type=jnp.float32) + b2_ref[...]

    # Disparity-gated blend of the two source frames + learned residual.
    alpha = jax.nn.sigmoid(d.astype(jnp.float32))             # (1, tm)
    f0 = frames[0:3, :].astype(jnp.float32)
    f1 = frames[3:6, :].astype(jnp.float32)
    out = y + f1 + alpha * (f0 - f1)
    o_ref[...] = out.astype(o_ref.dtype)


def model_forward(params, input_frames, F_kprime_to_k, F_n_to_k_s,
                  F_k_to_n_s, disparity_image, *, tile_m=32768):
    """Frame-synthesis head.  Returns output frame in NCHW, shape (N, 3, H, W)."""
    n, cf, h, w = input_frames.shape
    assert cf == 6, "input_frames expected to stack two RGB frames (6 channels)"
    hw = h * w

    # Free channel-major reshapes (no transpose, no concat, no extra HBM copy).
    frames = input_frames.reshape(n, 6, hw)
    fk     = F_kprime_to_k.reshape(n, F_kprime_to_k.shape[1], hw)      # (N,2,HW)
    fn     = F_n_to_k_s.reshape(n, F_n_to_k_s.shape[1], hw)            # (N,2,HW)
    fkn    = F_k_to_n_s.reshape(n, F_k_to_n_s.shape[1], hw)            # (N,2,HW)
    disp   = disparity_image.reshape(n, 1, hw)                         # (N,1,HW)

    w1t, b1, w2t, b2 = params          # w1t: (hid, 13), b1: (hid, 1)
    hid = w1t.shape[0]                 # w2t: (cout, hid), b2: (cout, 1)
    cout = w2t.shape[0]
    assert w1t.shape[1] == 13

    # Merge the five per-group layer-1 weights into one zero-padded (hid, 16)
    # bf16 weight; column order matches the in-kernel concat
    # [frames(6), fk(2), fn(2), fkn(2), d(1), zeros(3)].
    w1p = jnp.zeros((hid, 16), jnp.bfloat16).at[:, :13].set(
        w1t.astype(jnp.bfloat16))
    w2b = w2t.astype(jnp.bfloat16)
    b1f = b1.astype(jnp.float32)
    b2f = b2.astype(jnp.float32)

    # Lane tile: full H*W when small, otherwise a large multiple of 128.
    # Double-buffered per-step VMEM (8-sublane padded) ~= 384 * tm bytes
    # (~12 MiB at tm=32768).
    if hw <= tile_m:
        tm = hw
    else:
        tm = max(128, (tile_m // 128) * 128)
    grid = (n, pl.cdiv(hw, tm))

    def act_spec(c):
        return pl.BlockSpec((None, c, tm), lambda b, i: (b, 0, i))

    def w_spec(shape):
        return pl.BlockSpec(shape, lambda b, i: (0, 0))

    out = pl.pallas_call(
        _fused_kernel,
        out_shape=jax.ShapeDtypeStruct((n, cout, hw), input_frames.dtype),
        grid_spec=pltpu.PrefetchScalarGridSpec(
            num_scalar_prefetch=0,
            grid=grid,
            in_specs=[
                act_spec(6),                 # frames        (N,6,HW)
                act_spec(2),                 # F_kprime_to_k (N,2,HW)
                act_spec(2),                 # F_n_to_k_s    (N,2,HW)
                act_spec(2),                 # F_k_to_n_s    (N,2,HW)
                act_spec(1),                 # disparity     (N,1,HW)
                w_spec((hid, 16)),           # fused, padded w1 (bf16)
                w_spec((hid, 1)),            # b1 (f32)
                w_spec((cout, hid)),         # w2 (bf16)
                w_spec((cout, 1)),           # b2 (f32)
            ],
            out_specs=pl.BlockSpec((None, cout, tm), lambda b, i: (b, 0, i)),
        ),
        compiler_params=pltpu.CompilerParams(
            dimension_semantics=("parallel", "parallel"),
            vmem_limit_bytes=32 * 1024 * 1024),
    )(frames, fk, fn, fkn, disp, w1p, b1f, w2b, b2f)

    # (N, 3, H*W) -> (N, 3, H, W)  (free reshape)
    return out.reshape(n, cout, h, w)


def init_params(cin=13, hidden=32, cout=3):
    """Deterministic synthetic parameters (no checkpoint loading)."""
    k1, k2 = jax.random.split(jax.random.PRNGKey(42))
    w1t = jax.random.normal(k1, (hidden, cin), jnp.float32) * 0.1
    b1 = jnp.zeros((hidden, 1), jnp.float32)
    w2t = jax.random.normal(k2, (cout, hidden), jnp.float32) * 0.1
    b2 = jnp.zeros((cout, 1), jnp.float32)
    return (w1t, b1, w2t, b2)


if __name__ == "__main__":
    N, H, W = 2, 16, 16
    key = jax.random.PRNGKey(0)
    k0, k1, k2, k3, k4 = jax.random.split(key, 5)

    input_frames    = jax.random.normal(k0, (N, 6, H, W), jnp.float32)
    F_kprime_to_k   = jax.random.normal(k1, (N, 2, H, W), jnp.float32)
    F_n_to_k_s      = jax.random.normal(k2, (N, 2, H, W), jnp.float32)
    F_k_to_n_s      = jax.random.normal(k3, (N, 2, H, W), jnp.float32)
    disparity_image = jax.random.normal(k4, (N, 1, H, W), jnp.float32)

    params = init_params(cin=13, hidden=32, cout=3)

    out = model_forward(params, input_frames, F_kprime_to_k,
                        F_n_to_k_s, F_k_to_n_s, disparity_image)
    jax.block_until_ready(out)
    assert out.shape == (N, 3, H, W), out.shape
    print("KERNEL_OK")
</pallas_src>

<mosaic_0001>
module attributes {stable_mosaic.version = 11 : i64} {
  func.func @_fused_kernel(%arg0: i32, %arg1: i32, %arg2: memref<1x6x256xf32, #tpu.memory_space<vmem>>, %arg3: memref<1x2x256xf32, #tpu.memory_space<vmem>>, %arg4: memref<1x2x256xf32, #tpu.memory_space<vmem>>, %arg5: memref<1x2x256xf32, #tpu.memory_space<vmem>>, %arg6: memref<1x1x256xf32, #tpu.memory_space<vmem>>, %arg7: memref<32x16xbf16, #tpu.memory_space<vmem>>, %arg8: memref<32x1xf32, #tpu.memory_space<vmem>>, %arg9: memref<3x32xbf16, #tpu.memory_space<vmem>>, %arg10: memref<3x1xf32, #tpu.memory_space<vmem>>, %arg11: memref<1x3x256xf32, #tpu.memory_space<vmem>>) attributes {dimension_semantics = [#tpu.dimension_semantics<parallel>, #tpu.dimension_semantics<parallel>], iteration_bounds = array<i64: 2, 1>, scalar_prefetch = 0 : i64, scratch_operands = 0 : i64, tpu.core_type = #tpu.core_type<tc>, window_params = [{transform_indices = @transform_0, window_bounds = array<i64: 1, 6, 256>}, {transform_indices = @transform_1, window_bounds = array<i64: 1, 2, 256>}, {transform_indices = @transform_2, window_bounds = array<i64: 1, 2, 256>}, {transform_indices = @transform_3, window_bounds = array<i64: 1, 2, 256>}, {transform_indices = @transform_4, window_bounds = array<i64: 1, 1, 256>}, {pipeline_mode = #tpu.pipeline_mode<synchronous>, transform_indices = @transform_5, window_bounds = array<i64: 32, 16>}, {pipeline_mode = #tpu.pipeline_mode<synchronous>, transform_indices = @transform_6, window_bounds = array<i64: 32, 1>}, {pipeline_mode = #tpu.pipeline_mode<synchronous>, transform_indices = @transform_7, window_bounds = array<i64: 3, 32>}, {pipeline_mode = #tpu.pipeline_mode<synchronous>, transform_indices = @transform_8, window_bounds = array<i64: 3, 1>}, {transform_indices = @transform_9, window_bounds = array<i64: 1, 3, 256>}]} {
    %c0 = arith.constant 0 : index
    %c0_0 = arith.constant 0 : index
    %c0_1 = arith.constant 0 : index
    %0 = vector.load %arg2[%c0, %c0_0, %c0_1] : memref<1x6x256xf32, #tpu.memory_space<vmem>>, vector<1x6x256xf32>
    %1 = vector.shape_cast %0 : vector<1x6x256xf32> to vector<6x256xf32>
    %c0_2 = arith.constant 0 : index
    %c0_3 = arith.constant 0 : index
    %c0_4 = arith.constant 0 : index
    %2 = vector.load %arg3[%c0_2, %c0_3, %c0_4] : memref<1x2x256xf32, #tpu.memory_space<vmem>>, vector<1x2x256xf32>
    %3 = vector.shape_cast %2 : vector<1x2x256xf32> to vector<2x256xf32>
    %c0_5 = arith.constant 0 : index
    %c0_6 = arith.constant 0 : index
    %c0_7 = arith.constant 0 : index
    %4 = vector.load %arg4[%c0_5, %c0_6, %c0_7] : memref<1x2x256xf32, #tpu.memory_space<vmem>>, vector<1x2x256xf32>
    %5 = vector.shape_cast %4 : vector<1x2x256xf32> to vector<2x256xf32>
    %c0_8 = arith.constant 0 : index
    %c0_9 = arith.constant 0 : index
    %c0_10 = arith.constant 0 : index
    %6 = vector.load %arg5[%c0_8, %c0_9, %c0_10] : memref<1x2x256xf32, #tpu.memory_space<vmem>>, vector<1x2x256xf32>
    %7 = vector.shape_cast %6 : vector<1x2x256xf32> to vector<2x256xf32>
    %c0_11 = arith.constant 0 : index
    %c0_12 = arith.constant 0 : index
    %c0_13 = arith.constant 0 : index
    %8 = vector.load %arg6[%c0_11, %c0_12, %c0_13] : memref<1x1x256xf32, #tpu.memory_space<vmem>>, vector<1x1x256xf32>
    %9 = vector.shape_cast %8 : vector<1x1x256xf32> to vector<1x256xf32>
    %cst = arith.constant 0.000000e+00 : f32
    %10 = vector.broadcast %cst : f32 to vector<3x256xf32>
    %11 = tpu.concatenate %1, %3, %5, %7, %9, %10 in 0 : vector<6x256xf32>, vector<2x256xf32>, vector<2x256xf32>, vector<2x256xf32>, vector<1x256xf32>, vector<3x256xf32> -> vector<16x256xf32>
    %12 = arith.truncf %11 : vector<16x256xf32> to vector<16x256xbf16>
    %c0_14 = arith.constant 0 : index
    %c0_15 = arith.constant 0 : index
    %13 = vector.load %arg7[%c0_14, %c0_15] : memref<32x16xbf16, #tpu.memory_space<vmem>>, vector<32x16xbf16>
    %cst_16 = arith.constant dense<0.000000e+00> : vector<32x256xf32>
    %14 = tpu.matmul %13, %12, %cst_16 {dimension_numbers = #tpu.dot_dimension_numbers<[1], [0], [0], [1], [0, 0, 1, 1], [], []>} : vector<32x16xbf16>, vector<16x256xbf16>, vector<32x256xf32> -> vector<32x256xf32>
    %c0_17 = arith.constant 0 : index
    %c0_18 = arith.constant 0 : index
    %15 = vector.load %arg8[%c0_17, %c0_18] : memref<32x1xf32, #tpu.memory_space<vmem>>, vector<32x1xf32>
    %16 = vector.broadcast %15 : vector<32x1xf32> to vector<32x256xf32>
    %17 = arith.addf %14, %16 : vector<32x256xf32>
    %cst_19 = arith.constant 0.000000e+00 : f32
    %18 = vector.broadcast %cst_19 : f32 to vector<32x256xf32>
    %19 = arith.maximumf %17, %18 : vector<32x256xf32>
    %c0_20 = arith.constant 0 : index
    %c0_21 = arith.constant 0 : index
    %20 = vector.load %arg9[%c0_20, %c0_21] : memref<3x32xbf16, #tpu.memory_space<vmem>>, vector<3x32xbf16>
    %21 = arith.truncf %19 : vector<32x256xf32> to vector<32x256xbf16>
    %cst_22 = arith.constant dense<0.000000e+00> : vector<3x256xf32>
    %22 = tpu.matmul %20, %21, %cst_22 {dimension_numbers = #tpu.dot_dimension_numbers<[1], [0], [0], [1], [0, 0, 1, 1], [], []>} : vector<3x32xbf16>, vector<32x256xbf16>, vector<3x256xf32> -> vector<3x256xf32>
    %c0_23 = arith.constant 0 : index
    %c0_24 = arith.constant 0 : index
    %23 = vector.load %arg10[%c0_23, %c0_24] : memref<3x1xf32, #tpu.memory_space<vmem>>, vector<3x1xf32>
    %24 = vector.broadcast %23 : vector<3x1xf32> to vector<3x256xf32>
    %25 = arith.addf %22, %24 : vector<3x256xf32>
    %26 = arith.negf %9 : vector<1x256xf32>
    %27 = math.exp %26 : vector<1x256xf32>
    %cst_25 = arith.constant 1.000000e+00 : f32
    %28 = vector.broadcast %cst_25 : f32 to vector<1x256xf32>
    %29 = arith.addf %28, %27 : vector<1x256xf32>
    %30 = arith.divf %28, %29 : vector<1x256xf32>
    %31 = vector.extract_strided_slice %1 {offsets = [0, 0], sizes = [3, 256], strides = [1, 1]} : vector<6x256xf32> to vector<3x256xf32>
    %32 = vector.extract_strided_slice %1 {offsets = [3, 0], sizes = [3, 256], strides = [1, 1]} : vector<6x256xf32> to vector<3x256xf32>
    %33 = arith.addf %25, %32 : vector<3x256xf32>
    %34 = arith.subf %31, %32 : vector<3x256xf32>
    %35 = vector.broadcast %30 : vector<1x256xf32> to vector<3x256xf32>
    %36 = arith.mulf %35, %34 : vector<3x256xf32>
    %37 = arith.addf %33, %36 : vector<3x256xf32>
    %c0_26 = arith.constant 0 : index
    %c0_27 = arith.constant 0 : index
    %c0_28 = arith.constant 0 : index
    %38 = vector.load %arg11[%c0_26, %c0_27, %c0_28] : memref<1x3x256xf32, #tpu.memory_space<vmem>>, vector<1x3x256xf32>
    %39 = vector.shape_cast %38 : vector<1x3x256xf32> to vector<3x256xf32>
    %40 = vector.shape_cast %37 : vector<3x256xf32> to vector<1x3x256xf32>
    tpu.vector_store %arg11[%c0_26, %c0_27, %c0_28], %40 {strides = array<i32>} : memref<1x3x256xf32, #tpu.memory_space<vmem>>, vector<1x3x256xf32>,
    return
  }
  func.func @transform_0(%arg0: i32, %arg1: i32) -> (i32, i32, i32) {
    %c0_i32 = arith.constant 0 : i32
    %c0_i32_0 = arith.constant 0 : i32
    return %arg0, %c0_i32, %arg1 : i32, i32, i32
  }
  func.func @transform_1(%arg0: i32, %arg1: i32) -> (i32, i32, i32) {
    %c0_i32 = arith.constant 0 : i32
    %c0_i32_0 = arith.constant 0 : i32
    return %arg0, %c0_i32, %arg1 : i32, i32, i32
  }
  func.func @transform_2(%arg0: i32, %arg1: i32) -> (i32, i32, i32) {
    %c0_i32 = arith.constant 0 : i32
    %c0_i32_0 = arith.constant 0 : i32
    return %arg0, %c0_i32, %arg1 : i32, i32, i32
  }
  func.func @transform_3(%arg0: i32, %arg1: i32) -> (i32, i32, i32) {
    %c0_i32 = arith.constant 0 : i32
    %c0_i32_0 = arith.constant 0 : i32
    return %arg0, %c0_i32, %arg1 : i32, i32, i32
  }
  func.func @transform_4(%arg0: i32, %arg1: i32) -> (i32, i32, i32) {
    %c0_i32 = arith.constant 0 : i32
    %c0_i32_0 = arith.constant 0 : i32
    return %arg0, %c0_i32, %arg1 : i32, i32, i32
  }
  func.func @transform_5(%arg0: i32, %arg1: i32) -> (i32, i32) {
    %c0_i32 = arith.constant 0 : i32
    %c0_i32_0 = arith.constant 0 : i32
    %c0_i32_1 = arith.constant 0 : i32
    return %c0_i32, %c0_i32_0 : i32, i32
  }
  func.func @transform_6(%arg0: i32, %arg1: i32) -> (i32, i32) {
    %c0_i32 = arith.constant 0 : i32
    %c0_i32_0 = arith.constant 0 : i32
    %c0_i32_1 = arith.constant 0 : i32
    return %c0_i32, %c0_i32_0 : i32, i32
  }
  func.func @transform_7(%arg0: i32, %arg1: i32) -> (i32, i32) {
    %c0_i32 = arith.constant 0 : i32
    %c0_i32_0 = arith.constant 0 : i32
    %c0_i32_1 = arith.constant 0 : i32
    return %c0_i32, %c0_i32_0 : i32, i32
  }
  func.func @transform_8(%arg0: i32, %arg1: i32) -> (i32, i32) {
    %c0_i32 = arith.constant 0 : i32
    %c0_i32_0 = arith.constant 0 : i32
    %c0_i32_1 = arith.constant 0 : i32
    return %c0_i32, %c0_i32_0 : i32, i32
  }
  func.func @transform_9(%arg0: i32, %arg1: i32) -> (i32, i32, i32) {
    %c0_i32 = arith.constant 0 : i32
    %c0_i32_0 = arith.constant 0 : i32
    return %arg0, %c0_i32, %arg1 : i32, i32, i32
  }
}

</mosaic_0001>

<llo_original>
// kernel: tpu_custom_call.1
$region0: #{tpu_custom_call.1}
  #allocation0 [shape = 'u32[]', space=smem, size = 0x4, offset = 0x4, fixed_abs, tag = 'smem constant byte address 0x4 - core index']
  #allocation1 [shape = 'u32[144,128]{1,0:T(1,128)}', space=vmem, size = 0x12000, scoped, tag = 'internal scratch']
  %s0 = inlined_call_operand.vmem [shape: f32[2,6,256], index: 0, kind: input, shape index: {}]
  %s1 = inlined_call_operand.vmem [shape: f32[2,2,256], index: 1, kind: input, shape index: {}]
  %s2 = inlined_call_operand.vmem [shape: f32[2,2,256], index: 2, kind: input, shape index: {}]
  %s3 = inlined_call_operand.vmem [shape: f32[2,2,256], index: 3, kind: input, shape index: {}]
  %s4 = inlined_call_operand.vmem [shape: f32[2,1,256], index: 4, kind: input, shape index: {}]
  %s5 = inlined_call_operand.vmem [shape: bf16[32,16], index: 5, kind: input, shape index: {}]
  %s6 = inlined_call_operand.vmem [shape: f32[32,1], index: 6, kind: input, shape index: {}]
  %s7 = inlined_call_operand.vmem [shape: bf16[3,32], index: 7, kind: input, shape index: {}]
  %s8 = inlined_call_operand.vmem [shape: f32[3,1], index: 8, kind: input, shape index: {}]
  %s9 = inlined_call_operand.vmem [shape: f32[2,3,256], index: 9, kind: output, shape index: {}]
  %s10 = sld [smem:[#allocation0]]
  $region69: #{tpu_custom_call.1} parent=0
    _
  %s12 = ssub.s32 1, %s10
  %s13 = scalar_select 0, %s12, %s10
  loop: start=0, step=1, limit=4
  $region2: #{tpu_custom_call.1} parent=0 // loop_pre_header
    _
  $region3: #{tpu_custom_call.1} parent=0 // loop_header
    %s15 = sphi 0, %s19
    %p16 = scmp.ge.s32.totalorder %s15, 4
    %s22 = sphi 0, %s34
    %s23 = sphi 0, %s30
    %s24 = sphi 0, %s22
    %s25 = sphi 0, %s23
    %s26 = sphi 0, %s24
    %s27 = sphi 0, %s25
    %s39 = sphi 0, %s41
    %s42 = sphi 0, %s39
    %s43 = sphi 0, %s42
    %s59 = sphi 0, %s43
    %s67 = sphi 0, %s69
    %s70 = sphi 0, %s67
    %s71 = sphi 0, %s70
    %s87 = sphi 0, %s71
    %s95 = sphi 0, %s97
    %s98 = sphi 0, %s95
    %s99 = sphi 0, %s98
    %s115 = sphi 0, %s99
    %s123 = sphi 0, %s125
    %s126 = sphi 0, %s123
    %s127 = sphi 0, %s126
    %s143 = sphi 0, %s127
    %s151 = sphi 0, %s153
    %s154 = sphi 0, %s151
    %s155 = sphi 0, %s154
    %s171 = sphi 0, %s155
    %s175 = sphi 0, %s175
    %s177 = sphi 0, %s175
    %s178 = sphi 0, %s177
    %s192 = sphi 0, %s178
    %s196 = sphi 0, %s196
    %s198 = sphi 0, %s196
    %s199 = sphi 0, %s198
    %s213 = sphi 0, %s199
    %s217 = sphi 0, %s217
    %s219 = sphi 0, %s217
    %s220 = sphi 0, %s219
    %s234 = sphi 0, %s220
    %s238 = sphi 0, %s238
    %s240 = sphi 0, %s238
    %s241 = sphi 0, %s240
    %s255 = sphi 0, %s241
    %s263 = sphi 0, %s265
    %s266 = sphi 0, %s263
    %s267 = sphi 0, %s266
    %s283 = sphi 0, %s267
  $region4: #{tpu_custom_call.1} parent=0 // loop_header_branch
    %18 = sbr.rel (%p16) target = $region8
  $region5: #{tpu_custom_call.1} parent=0 // loop_body
    %s20 = ssub.s32 %s15, 1
    %s21 = ssub.s32 %s15, 2
    %s28 = sadd.s32 1, %s23
    %p29 = scmp.ge.s32.totalorder %s28, 1
    %s30 = scalar_select %p29, 0, %s28
    %s31 = sadd.s32 1, %s22
    %s32 = scalar_select %p29, %s31, %s22
    %p33 = scmp.ge.s32.totalorder %s32, 2
    %s34 = scalar_select %p33, 0, %s32
    %s35 = ssub.s32 %s22, %s34
    %s36 = ssub.s32 %s23, %s30
    %s37 = sor.u32 %s35, %s36
    %p38 = scmp.eq.s32.totalorder %s37, 0
    %s40 = sadd.s32 %s39, 1
    %s41 = scalar_select %p38, %s39, %s40
    %p44 = pneg %p38
    %p45 = scmp.eq.s32.totalorder %s15, 1
    %p46 = por %p44, %p45
    %p47 = scmp.ne.s32.totalorder %s39, %s42
    %p48 = scmp.eq.s32.totalorder %s15, 0
    %p49 = por %p47, %p48
    %p50 = scmp.ne.s32.totalorder %s39, %s42
    %p51 = scmp.eq.s32.totalorder %s20, 1
    %p52 = por %p50, %p51
    %p53 = scmp.ne.s32.totalorder %s42, %s43
    %p54 = scmp.eq.s32.totalorder %s20, 0
    %p55 = por %p53, %p54
    %p56 = scmp.ne.s32.totalorder %s42, %s43
    %p57 = scmp.eq.s32.totalorder %s21, 1
    %p58 = por %p56, %p57
    %p60 = scmp.ne.s32.totalorder %s43, %s59
    %p61 = scmp.eq.s32.totalorder %s21, 0
    %p62 = por %p60, %p61
    %s63 = ssub.s32 %s22, %s34
    %s64 = ssub.s32 %s23, %s30
    %s65 = sor.u32 %s63, %s64
    %p66 = scmp.eq.s32.totalorder %s65, 0
    %s68 = sadd.s32 %s67, 1
    %s69 = scalar_select %p66, %s67, %s68
    %p72 = pneg %p66
    %p73 = scmp.eq.s32.totalorder %s15, 1
    %p74 = por %p72, %p73
    %p75 = scmp.ne.s32.totalorder %s67, %s70
    %p76 = scmp.eq.s32.totalorder %s15, 0
    %p77 = por %p75, %p76
    %p78 = scmp.ne.s32.totalorder %s67, %s70
    %p79 = scmp.eq.s32.totalorder %s20, 1
    %p80 = por %p78, %p79
    %p81 = scmp.ne.s32.totalorder %s70, %s71
    %p82 = scmp.eq.s32.totalorder %s20, 0
    %p83 = por %p81, %p82
    %p84 = scmp.ne.s32.totalorder %s70, %s71
    %p85 = scmp.eq.s32.totalorder %s21, 1
    %p86 = por %p84, %p85
    %p88 = scmp.ne.s32.totalorder %s71, %s87
    %p89 = scmp.eq.s32.totalorder %s21, 0
    %p90 = por %p88, %p89
    %s91 = ssub.s32 %s22, %s34
    %s92 = ssub.s32 %s23, %s30
    %s93 = sor.u32 %s91, %s92
    %p94 = scmp.eq.s32.totalorder %s93, 0
    %s96 = sadd.s32 %s95, 1
    %s97 = scalar_select %p94, %s95, %s96
    %p100 = pneg %p94
    %p101 = scmp.eq.s32.totalorder %s15, 1
    %p102 = por %p100, %p101
    %p103 = scmp.ne.s32.totalorder %s95, %s98
    %p104 = scmp.eq.s32.totalorder %s15, 0
    %p105 = por %p103, %p104
    %p106 = scmp.ne.s32.totalorder %s95, %s98
    %p107 = scmp.eq.s32.totalorder %s20, 1
    %p108 = por %p106, %p107
    %p109 = scmp.ne.s32.totalorder %s98, %s99
    %p110 = scmp.eq.s32.totalorder %s20, 0
    %p111 = por %p109, %p110
    %p112 = scmp.ne.s32.totalorder %s98, %s99
    %p113 = scmp.eq.s32.totalorder %s21, 1
    %p114 = por %p112, %p113
    %p116 = scmp.ne.s32.totalorder %s99, %s115
    %p117 = scmp.eq.s32.totalorder %s21, 0
    %p118 = por %p116, %p117
    %s119 = ssub.s32 %s22, %s34
    %s120 = ssub.s32 %s23, %s30
    %s121 = sor.u32 %s119, %s120
    %p122 = scmp.eq.s32.totalorder %s121, 0
    %s124 = sadd.s32 %s123, 1
    %s125 = scalar_select %p122, %s123, %s124
    %p128 = pneg %p122
    %p129 = scmp.eq.s32.totalorder %s15, 1
    %p130 = por %p128, %p129
    %p131 = scmp.ne.s32.totalorder %s123, %s126
    %p132 = scmp.eq.s32.totalorder %s15, 0
    %p133 = por %p131, %p132
    %p134 = scmp.ne.s32.totalorder %s123, %s126
    %p135 = scmp.eq.s32.totalorder %s20, 1
    %p136 = por %p134, %p135
    %p137 = scmp.ne.s32.totalorder %s126, %s127
    %p138 = scmp.eq.s32.totalorder %s20, 0
    %p139 = por %p137, %p138
    %p140 = scmp.ne.s32.totalorder %s126, %s127
    %p141 = scmp.eq.s32.totalorder %s21, 1
    %p142 = por %p140, %p141
    %p144 = scmp.ne.s32.totalorder %s127, %s143
    %p145 = scmp.eq.s32.totalorder %s21, 0
    %p146 = por %p144, %p145
    %s147 = ssub.s32 %s22, %s34
    %s148 = ssub.s32 %s23, %s30
    %s149 = sor.u32 %s147, %s148
    %p150 = scmp.eq.s32.totalorder %s149, 0
    %s152 = sadd.s32 %s151, 1
    %s153 = scalar_select %p150, %s151, %s152
    %p156 = pneg %p150
    %p157 = scmp.eq.s32.totalorder %s15, 1
    %p158 = por %p156, %p157
    %p159 = scmp.ne.s32.totalorder %s151, %s154
    %p160 = scmp.eq.s32.totalorder %s15, 0
    %p161 = por %p159, %p160
    %p162 = scmp.ne.s32.totalorder %s151, %s154
    %p163 = scmp.eq.s32.totalorder %s20, 1
    %p164 = por %p162, %p163
    %p165 = scmp.ne.s32.totalorder %s154, %s155
    %p166 = scmp.eq.s32.totalorder %s20, 0
    %p167 = por %p165, %p166
    %p168 = scmp.ne.s32.totalorder %s154, %s155
    %p169 = scmp.eq.s32.totalorder %s21, 1
    %p170 = por %p168, %p169
    %p172 = scmp.ne.s32.totalorder %s155, %s171
    %p173 = scmp.eq.s32.totalorder %s21, 0
    %p174 = por %p172, %p173
    %s176 = sadd.s32 %s175, 1
    %p179 = scmp.eq.s32.totalorder %s15, 1
    %p180 = scmp.ne.s32.totalorder %s175, %s177
    %p181 = scmp.eq.s32.totalorder %s15, 0
    %p182 = por %p180, %p181
    %p183 = scmp.ne.s32.totalorder %s175, %s177
    %p184 = scmp.eq.s32.totalorder %s20, 1
    %p185 = por %p183, %p184
    %p186 = scmp.ne.s32.totalorder %s177, %s178
    %p187 = scmp.eq.s32.totalorder %s20, 0
    %p188 = por %p186, %p187
    %p189 = scmp.ne.s32.totalorder %s177, %s178
    %p190 = scmp.eq.s32.totalorder %s21, 1
    %p191 = por %p189, %p190
    %p193 = scmp.ne.s32.totalorder %s178, %s192
    %p194 = scmp.eq.s32.totalorder %s21, 0
    %p195 = por %p193, %p194
    %s197 = sadd.s32 %s196, 1
    %p200 = scmp.eq.s32.totalorder %s15, 1
    %p201 = scmp.ne.s32.totalorder %s196, %s198
    %p202 = scmp.eq.s32.totalorder %s15, 0
    %p203 = por %p201, %p202
    %p204 = scmp.ne.s32.totalorder %s196, %s198
    %p205 = scmp.eq.s32.totalorder %s20, 1
    %p206 = por %p204, %p205
    %p207 = scmp.ne.s32.totalorder %s198, %s199
    %p208 = scmp.eq.s32.totalorder %s20, 0
    %p209 = por %p207, %p208
    %p210 = scmp.ne.s32.totalorder %s198, %s199
    %p211 = scmp.eq.s32.totalorder %s21, 1
    %p212 = por %p210, %p211
    %p214 = scmp.ne.s32.totalorder %s199, %s213
    %p215 = scmp.eq.s32.totalorder %s21, 0
    %p216 = por %p214, %p215
    %s218 = sadd.s32 %s217, 1
    %p221 = scmp.eq.s32.totalorder %s15, 1
    %p222 = scmp.ne.s32.totalorder %s217, %s219
    %p223 = scmp.eq.s32.totalorder %s15, 0
    %p224 = por %p222, %p223
    %p225 = scmp.ne.s32.totalorder %s217, %s219
    %p226 = scmp.eq.s32.totalorder %s20, 1
    %p227 = por %p225, %p226
    %p228 = scmp.ne.s32.totalorder %s219, %s220
    %p229 = scmp.eq.s32.totalorder %s20, 0
    %p230 = por %p228, %p229
    %p231 = scmp.ne.s32.totalorder %s219, %s220
    %p232 = scmp.eq.s32.totalorder %s21, 1
    %p233 = por %p231, %p232
    %p235 = scmp.ne.s32.totalorder %s220, %s234
    %p236 = scmp.eq.s32.totalorder %s21, 0
    %p237 = por %p235, %p236
    %s239 = sadd.s32 %s238, 1
    %p242 = scmp.eq.s32.totalorder %s15, 1
    %p243 = scmp.ne.s32.totalorder %s238, %s240
    %p244 = scmp.eq.s32.totalorder %s15, 0
    %p245 = por %p243, %p244
    %p246 = scmp.ne.s32.totalorder %s238, %s240
    %p247 = scmp.eq.s32.totalorder %s20, 1
    %p248 = por %p246, %p247
    %p249 = scmp.ne.s32.totalorder %s240, %s241
    %p250 = scmp.eq.s32.totalorder %s20, 0
    %p251 = por %p249, %p250
    %p252 = scmp.ne.s32.totalorder %s240, %s241
    %p253 = scmp.eq.s32.totalorder %s21, 1
    %p254 = por %p252, %p253
    %p256 = scmp.ne.s32.totalorder %s241, %s255
    %p257 = scmp.eq.s32.totalorder %s21, 0
    %p258 = por %p256, %p257
    %s259 = ssub.s32 %s22, %s34
    %s260 = ssub.s32 %s23, %s30
    %s261 = sor.u32 %s259, %s260
    %p262 = scmp.eq.s32.totalorder %s261, 0
    %s264 = sadd.s32 %s263, 1
    %s265 = scalar_select %p262, %s263, %s264
    %p268 = pneg %p262
    %p269 = scmp.eq.s32.totalorder %s15, 1
    %p270 = por %p268, %p269
    %p271 = scmp.ne.s32.totalorder %s263, %s266
    %p272 = scmp.eq.s32.totalorder %s15, 0
    %p273 = por %p271, %p272
    %p274 = scmp.ne.s32.totalorder %s263, %s266
    %p275 = scmp.eq.s32.totalorder %s20, 1
    %p276 = por %p274, %p275
    %p277 = scmp.ne.s32.totalorder %s266, %s267
    %p278 = scmp.eq.s32.totalorder %s20, 0
    %p279 = por %p277, %p278
    %p280 = scmp.ne.s32.totalorder %s266, %s267
    %p281 = scmp.eq.s32.totalorder %s21, 1
    %p282 = por %p280, %p281
    %p284 = scmp.ne.s32.totalorder %s267, %s283
    %p285 = scmp.eq.s32.totalorder %s21, 0
    %p286 = por %p284, %p285
    %p287 = scmp.le.s32.totalorder 1, %s15
    %p288 = scmp.lt.s32.totalorder %s15, 3
    %p289 = pnand %p287, %p288
    %p290 = pneg %p289
    // Predicated region
    $region9: #{tpu_custom_call.1} parent=5 // pred_check
      _
    $region10: #{tpu_custom_call.1} parent=5 // pred_check_branch
      %292 = sbr.rel (%p289) target = $region12
    $region11: #{tpu_custom_call.1} parent=5 // pred_region
      %s293 = ssub.s32 %s15, 1
      // Predicated region
      $region13: #{tpu_custom_call.1} parent=11 // pred_check
        %p294 = pneg %p188
      $region14: #{tpu_custom_call.1} parent=11 // pred_check_branch
        %296 = sbr.rel (%p294) target = $region16
      $region15: #{tpu_custom_call.1} parent=11 // pred_region
        _
      $region16: #{tpu_custom_call.1} parent=11 // pred_fallthru
        _
      // Predicated region
      $region17: #{tpu_custom_call.1} parent=11 // pred_check
        %p297 = pneg %p209
      $region18: #{tpu_custom_call.1} parent=11 // pred_check_branch
        %299 = sbr.rel (%p297) target = $region20
      $region19: #{tpu_custom_call.1} parent=11 // pred_region
        _
      $region20: #{tpu_custom_call.1} parent=11 // pred_fallthru
        _
      // Predicated region
      $region21: #{tpu_custom_call.1} parent=11 // pred_check
        %p300 = pneg %p230
      $region22: #{tpu_custom_call.1} parent=11 // pred_check_branch
        %302 = sbr.rel (%p300) target = $region24
      $region23: #{tpu_custom_call.1} parent=11 // pred_region
        _
      $region24: #{tpu_custom_call.1} parent=11 // pred_fallthru
        _
      // Predicated region
      $region25: #{tpu_custom_call.1} parent=11 // pred_check
        %p303 = pneg %p251
      $region26: #{tpu_custom_call.1} parent=11 // pred_check_branch
        %305 = sbr.rel (%p303) target = $region28
      $region27: #{tpu_custom_call.1} parent=11 // pred_region
        _
      $region28: #{tpu_custom_call.1} parent=11 // pred_fallthru
        _
    $region12: #{tpu_custom_call.1} parent=5 // pred_fallthru
      _
    %p306 = scmp.lt.s32.totalorder %s15, 2
    // Predicated region
    $region29: #{tpu_custom_call.1} parent=5 // pred_check
      %p307 = pneg %p306
    $region30: #{tpu_custom_call.1} parent=5 // pred_check_branch
      %309 = sbr.rel (%p307) target = $region32
    $region31: #{tpu_custom_call.1} parent=5 // pred_region
      // Predicated region
      $region33: #{tpu_custom_call.1} parent=31 // pred_check
        %p310 = pneg %p49
      $region34: #{tpu_custom_call.1} parent=31 // pred_check_branch
        %312 = sbr.rel (%p310) target = $region36
      $region35: #{tpu_custom_call.1} parent=31 // pred_region
        %s313 = smul.u32 2, %s23
        %p314 = scmp.lt.s32.totalorder %s22, 1
        %s315 = scalar_select %p314, %s22, 1
        %p316 = scmp.lt.s32.totalorder %s313, 1
        %s317 = scalar_select %p316, %s313, 1
        %s318 = smul.addr %s315, 2
        %s319 = sadd.s32 %s317, %s318
        %s320 = smul.addr %s319, 8
        %s321 = scalar_lea.vmem %s0, %s320
        %s322 = smul.u32 2, %s23
      $region36: #{tpu_custom_call.1} parent=31 // pred_fallthru
        _
      // Predicated region
      $region37: #{tpu_custom_call.1} parent=31 // pred_check
        %p323 = pneg %p77
      $region38: #{tpu_custom_call.1} parent=31 // pred_check_branch
        %325 = sbr.rel (%p323) target = $region40
      $region39: #{tpu_custom_call.1} parent=31 // pred_region
        %s326 = smul.u32 2, %s23
        %p327 = scmp.lt.s32.totalorder %s22, 1
        %s328 = scalar_select %p327, %s22, 1
        %p329 = scmp.lt.s32.totalorder %s326, 1
        %s330 = scalar_select %p329, %s326, 1
        %s331 = smul.addr %s328, 2
        %s332 = sadd.s32 %s330, %s331
        %s333 = smul.addr %s332, 2
        %s334 = scalar_lea.vmem %s1, %s333
        %s335 = smul.u32 2, %s23
      $region40: #{tpu_custom_call.1} parent=31 // pred_fallthru
        _
      // Predicated region
      $region41: #{tpu_custom_call.1} parent=31 // pred_check
        %p336 = pneg %p105
      $region42: #{tpu_custom_call.1} parent=31 // pred_check_branch
        %338 = sbr.rel (%p336) target = $region44
      $region43: #{tpu_custom_call.1} parent=31 // pred_region
        %s339 = smul.u32 2, %s23
        %p340 = scmp.lt.s32.totalorder %s22, 1
        %s341 = scalar_select %p340, %s22, 1
        %p342 = scmp.lt.s32.totalorder %s339, 1
        %s343 = scalar_select %p342, %s339, 1
        %s344 = smul.addr %s341, 2
        %s345 = sadd.s32 %s343, %s344
        %s346 = smul.addr %s345, 2
        %s347 = scalar_lea.vmem %s2, %s346
        %s348 = smul.u32 2, %s23
      $region44: #{tpu_custom_call.1} parent=31 // pred_fallthru
        _
      // Predicated region
      $region45: #{tpu_custom_call.1} parent=31 // pred_check
        %p349 = pneg %p133
      $region46: #{tpu_custom_call.1} parent=31 // pred_check_branch
        %351 = sbr.rel (%p349) target = $region48
      $region47: #{tpu_custom_call.1} parent=31 // pred_region
        %s352 = smul.u32 2, %s23
        %p353 = scmp.lt.s32.totalorder %s22, 1
        %s354 = scalar_select %p353, %s22, 1
        %p355 = scmp.lt.s32.totalorder %s352, 1
        %s356 = scalar_select %p355, %s352, 1
        %s357 = smul.addr %s354, 2
        %s358 = sadd.s32 %s356, %s357
        %s359 = smul.addr %s358, 2
        %s360 = scalar_lea.vmem %s3, %s359
        %s361 = smul.u32 2, %s23
      $region48: #{tpu_custom_call.1} parent=31 // pred_fallthru
        _
      // Predicated region
      $region49: #{tpu_custom_call.1} parent=31 // pred_check
        %p362 = pneg %p161
      $region50: #{tpu_custom_call.1} parent=31 // pred_check_branch
        %364 = sbr.rel (%p362) target = $region52
      $region51: #{tpu_custom_call.1} parent=31 // pred_region
        %s365 = smul.u32 2, %s23
        %p366 = scmp.lt.s32.totalorder %s22, 1
        %s367 = scalar_select %p366, %s22, 1
        %p368 = scmp.lt.s32.totalorder %s365, 1
        %s369 = scalar_select %p368, %s365, 1
        %s370 = smul.addr %s367, 2
        %s371 = sadd.s32 %s369, %s370
        %s372 = scalar_lea.vmem %s4, %s371
        %s373 = smul.u32 2, %s23
      $region52: #{tpu_custom_call.1} parent=31 // pred_fallthru
        _
    $region32: #{tpu_custom_call.1} parent=5 // pred_fallthru
      _
    %p374 = scmp.le.s32.totalorder 1, %s15
    %p375 = scmp.lt.s32.totalorder %s15, 3
    %p376 = pnand %p374, %p375
    %p377 = pneg %p376
    // Predicated region
    $region53: #{tpu_custom_call.1} parent=5 // pred_check
      _
    $region54: #{tpu_custom_call.1} parent=5 // pred_check_branch
      %379 = sbr.rel (%p376) target = $region56
    $region55: #{tpu_custom_call.1} parent=5 // pred_region
      %s380 = ssub.s32 %s15, 1
      %s381 = smul.u32 2, %s25
      %p382 = scmp.lt.s32.totalorder %s24, 1
      %s383 = scalar_select %p382, %s24, 1
      %p384 = scmp.lt.s32.totalorder %s381, 1
      %s385 = scalar_select %p384, %s381, 1
      %s386 = smul.addr %s383, 2
      %s387 = sadd.s32 %s385, %s386
      %s388 = smul.addr %s387, 8
      %s389 = scalar_lea.vmem %s0, %s388
      %p390 = pneg %p55
      %p391 = pneg %p52
      %s392 = smul.u32 2, %s25
      %p393 = scmp.lt.s32.totalorder %s24, 1
      %s394 = scalar_select %p393, %s24, 1
      %p395 = scmp.lt.s32.totalorder %s392, 1
      %s396 = scalar_select %p395, %s392, 1
      %s397 = smul.addr %s394, 2
      %s398 = sadd.s32 %s396, %s397
      %s399 = smul.addr %s398, 2
      %s400 = scalar_lea.vmem %s1, %s399
      %p401 = pneg %p83
      %p402 = pneg %p80
      %s403 = smul.u32 2, %s25
      %p404 = scmp.lt.s32.totalorder %s24, 1
      %s405 = scalar_select %p404, %s24, 1
      %p406 = scmp.lt.s32.totalorder %s403, 1
      %s407 = scalar_select %p406, %s403, 1
      %s408 = smul.addr %s405, 2
      %s409 = sadd.s32 %s407, %s408
      %s410 = smul.addr %s409, 2
      %s411 = scalar_lea.vmem %s2, %s410
      %p412 = pneg %p111
      %p413 = pneg %p108
      %s414 = smul.u32 2, %s25
      %p415 = scmp.lt.s32.totalorder %s24, 1
      %s416 = scalar_select %p415, %s24, 1
      %p417 = scmp.lt.s32.totalorder %s414, 1
      %s418 = scalar_select %p417, %s414, 1
      %s419 = smul.addr %s416, 2
      %s420 = sadd.s32 %s418, %s419
      %s421 = smul.addr %s420, 2
      %s422 = scalar_lea.vmem %s3, %s421
      %p423 = pneg %p139
      %p424 = pneg %p136
      %s425 = smul.u32 2, %s25
      %p426 = scmp.lt.s32.totalorder %s24, 1
      %s427 = scalar_select %p426, %s24, 1
      %p428 = scmp.lt.s32.totalorder %s425, 1
      %s429 = scalar_select %p428, %s425, 1
      %s430 = smul.addr %s427, 2
      %s431 = sadd.s32 %s429, %s430
      %s432 = scalar_lea.vmem %s4, %s431
      %p433 = pneg %p167
      %p434 = pneg %p164
      %p435 = pneg %p188
      %p436 = pneg %p185
      %p437 = pneg %p209
      %p438 = pneg %p206
      %p439 = pneg %p230
      %p440 = pneg %p227
      %p441 = pneg %p251
      %p442 = pneg %p248
      %p443 = pneg %p279
      %p444 = pneg %p276
      %s445 = smul.u32 2, %s25
      %p446 = scmp.lt.s32.totalorder %s24, 1
      %s447 = scalar_select %p446, %s24, 1
      %p448 = scmp.lt.s32.totalorder %s445, 1
      %s449 = scalar_select %p448, %s445, 1
      %s450 = smul.addr %s447, 2
      %s451 = sadd.s32 %s449, %s450
      %s452 = smul.addr %s451, 4
      %s453 = scalar_lea.vmem %s9, %s452
      %s454 = smul.u32 2, %s25
      %p455 = scmp.lt.s32.totalorder %s24, 1
      %s456 = scalar_select %p455, %s24, 1
      %p457 = scmp.lt.s32.totalorder %s454, 1
      %s458 = scalar_select %p457, %s454, 1
      %s459 = smul.addr %s456, 2
      %s460 = sadd.s32 %s458, %s459
      %s461 = smul.addr %s460, 8
      %s462 = scalar_lea.vmem %s0, %s461
      %s463 = smul.u32 2, %s25
      %s464 = smul.u32 2, %s25
      %p465 = scmp.lt.s32.totalorder %s24, 1
      %s466 = scalar_select %p465, %s24, 1
      %p467 = scmp.lt.s32.totalorder %s464, 1
      %s468 = scalar_select %p467, %s464, 1
      %s469 = smul.addr %s466, 2
      %s470 = sadd.s32 %s468, %s469
      %s471 = smul.addr %s470, 2
      %s472 = scalar_lea.vmem %s1, %s471
      %s473 = smul.u32 2, %s25
      %s474 = smul.u32 2, %s25
      %p475 = scmp.lt.s32.totalorder %s24, 1
      %s476 = scalar_select %p475, %s24, 1
      %p477 = scmp.lt.s32.totalorder %s474, 1
      %s478 = scalar_select %p477, %s474, 1
      %s479 = smul.addr %s476, 2
      %s480 = sadd.s32 %s478, %s479
      %s481 = smul.addr %s480, 2
      %s482 = scalar_lea.vmem %s2, %s481
      %s483 = smul.u32 2, %s25
      %s484 = smul.u32 2, %s25
      %p485 = scmp.lt.s32.totalorder %s24, 1
      %s486 = scalar_select %p485, %s24, 1
      %p487 = scmp.lt.s32.totalorder %s484, 1
      %s488 = scalar_select %p487, %s484, 1
      %s489 = smul.addr %s486, 2
      %s490 = sadd.s32 %s488, %s489
      %s491 = smul.addr %s490, 2
      %s492 = scalar_lea.vmem %s3, %s491
      %s493 = smul.u32 2, %s25
      %s494 = smul.u32 2, %s25
      %p495 = scmp.lt.s32.totalorder %s24, 1
      %s496 = scalar_select %p495, %s24, 1
      %p497 = scmp.lt.s32.totalorder %s494, 1
      %s498 = scalar_select %p497, %s494, 1
      %s499 = smul.addr %s496, 2
      %s500 = sadd.s32 %s498, %s499
      %s501 = scalar_lea.vmem %s4, %s500
      %s502 = smul.u32 2, %s25
      %s503 = smul.u32 2, %s25
      %p504 = scmp.lt.s32.totalorder %s24, 1
      %s505 = scalar_select %p504, %s24, 1
      %p506 = scmp.lt.s32.totalorder %s503, 1
      %s507 = scalar_select %p506, %s503, 1
      %s508 = smul.addr %s505, 2
      %s509 = sadd.s32 %s507, %s508
      %s510 = smul.addr %s509, 4
      %s511 = scalar_lea.vmem %s9, %s510
      %s512 = smul.u32 2, %s25
      %v514 = vld [vmem:[%s462] sm:$0x3f]
      %v515 = vld [vmem:[%s462 + $0x8] sm:$0x3f]
      %v516 = vld [vmem:[%s472] sm:$0xf]
      %v517 = vld [vmem:[%s482] sm:$0xf]
      %v518 = vld [vmem:[%s492] sm:$0xf]
      %v519 = vld [vmem:[%s501] sm:$0x3]
      %v521 = vcombine.low %v516, %v516
      %v523 = vunpack.c.l.s4 1983009808
      %v524 = vunpack.c.0.s8 %v523
      %v525 = vlaneseq
      %v526 = vshrl.u32 %v525, 7
      %v527 = vsub.s32 %v524, %v526
      %v528 = vrot.slane %v521, %v527
      %v529 = vcombine.low %v528, %v528
      %v534 = vunpack.c.l.s4 1983009808
      %v535 = vunpack.c.0.s8 %v534
      %v536 = vlaneseq
      %v537 = vshrl.u32 %v536, 7
      %v538 = vsub.s32 %v535, %v537
      %v539 = vrot.slane %v517, %v538
      %v540 = vcombine.high %v539, %v539
      %v544 = vcombine.low %v518, %v518
      %v546 = vunpack.c.l.s4 1983009808
      %v547 = vunpack.c.0.s8 %v546
      %v548 = vlaneseq
      %v549 = vshrl.u32 %v548, 7
      %v550 = vsub.s32 %v547, %v549
      %v551 = vrot.slane %v544, %v550
      %v552 = vcombine.high %v551, %v551
      %v556 = vlaneseq
      %v557 = vshrl.u32 %v556, 7
      %v558 = vsub.s32 0, %v557
      %v559 = vrot.slane %v519, %v558
      %v560 = vlaneseq
      %v561 = vshrl.u32 %v560, 7
      %v562 = vsub.s32 1, %v561
      %v563 = vrot.slane %v519, %v562
      %vm566 = vcmask 1045504
      %v567 = vsel %vm566, %v514, %v529
      %v568 = vsel %vm566, %v515, %v528
      %vm569 = vcmask 1041408
      %v570 = vsel %vm569, %v539, %v551
      %v571 = vsel %vm569, %v540, %v552
      %vm572 = vcmask 1043456
      %v573 = vsel %vm572, %v570, %v559
      %v574 = vsel %vm572, %v571, %v563
      %vm575 = vcmask 1044480
      %v576 = vsel %vm575, %v573, 0.0
      %v577 = vsel %vm575, %v574, 0.0
      %v578 = vpack.c.bf16 %v576, %v567
      %v579 = vpack.c.bf16 %v577, %v568
      %v580 = vld [vmem:[%s5] sm:$0xf]
      %v581 = vld [vmem:[%s5 + $0x4] sm:$0xf]
      %v582 = vld [vmem:[%s5 + $0x8] sm:$0xf]
      %v583 = vld [vmem:[%s5 + $0xc] sm:$0xf]
      %v584 = vld [vmem:[%s6] sm:$0xff]
      %v585 = vld [vmem:[%s6 + $0x8] sm:$0xff]
      %v586 = vld [vmem:[%s6 + $0x10] sm:$0xff]
      %v587 = vld [vmem:[%s6 + $0x18] sm:$0xff]
      %589 = vset.pattern.permute.xlu0 0
      %590 = vperm.xlu0 %589, %v584
      %v591 = vpop.permute.xlu0 %590
      %594 = vset.pattern.permute.xlu0 0
      %595 = vperm.xlu0 %594, %v585
      %v596 = vpop.permute.xlu0 %595
      %599 = vset.pattern.permute.xlu0 0
      %600 = vperm.xlu0 %599, %v586
      %v601 = vpop.permute.xlu0 %600
      %604 = vset.pattern.permute.xlu0 0
      %605 = vperm.xlu0 %604, %v587
      %v606 = vpop.permute.xlu0 %605
      %v612 = vunpack.c.l.b16 %v580
      %v613 = vunpack.c.l.b16 %v581
      %v614 = vunpack.c.l.b16 %v582
      %v615 = vunpack.c.l.b16 %v583
      %v616 = vpack.c.b16 %v613, %v612
      %v617 = vpack.c.b16 %v615, %v614
      %vm618 = vcmask 130048
      %v620 = vsel %vm618, %v616, 0
      %v623 = vsel %vm618, %v617, 0
      %625 = vmatprep.subr.bf16.mxu0 %v579
      %626 = vmatpush1.bf16.msra.mxu0 %v578
      %627 = vmatprep.subr.bf16.mxu0 0
      %628 = vmatpush1.bf16.msra.mxu0 0
      %629 = vmatprep.subr.bf16.mxu0 0
      %630 = vmatpush1.bf16.msra.mxu0 0
      %631 = vmatprep.subr.bf16.mxu0 0
      %632 = vmatpush1.bf16.msra.mxu0 0
      %633 = vmatprep.subr.bf16.mxu0 0
      %634 = vmatpush1.bf16.msra.mxu0 0
      %635 = vmatprep.subr.bf16.mxu0 0
      %636 = vmatpush1.bf16.msra.mxu0 0
      %637 = vmatprep.subr.bf16.mxu0 0
      %638 = vmatpush1.bf16.msra.mxu0 0
      %639 = vmatprep.subr.bf16.mxu0 0
      %640 = vmatpush1.bf16.msra.mxu0 0
      %641 = vmatprep.subr.bf16.mxu0 0
      %642 = vmatpush1.bf16.msra.mxu0 0
      %643 = vmatprep.subr.bf16.mxu0 0
      %644 = vmatpush1.bf16.msra.mxu0 0
      %645 = vmatprep.subr.bf16.mxu0 0
      %646 = vmatpush1.bf16.msra.mxu0 0
      %647 = vmatprep.subr.bf16.mxu0 0
      %648 = vmatpush1.bf16.msra.mxu0 0
      %649 = vmatprep.subr.bf16.mxu0 0
      %650 = vmatpush1.bf16.msra.mxu0 0
      %651 = vmatprep.subr.bf16.mxu0 0
      %652 = vmatpush1.bf16.msra.mxu0 0
      %653 = vmatprep.subr.bf16.mxu0 0
      %654 = vmatpush1.bf16.msra.mxu0 0
      %655 = vmatprep.subr.bf16.mxu0 0
      %656 = vmatpush1.bf16.msra.mxu0 0
      %657 = vmatprep.mubr.bf16.mxu0 0
      %658 = vmatmul.mubr.bf16.gmra.mrb[0].mxu0 %v620
      %v659 = vpop.f32.mrb[0].mxu0
      %v660 = vadd.f32 %v591, %v659
      %v661 = vpop.f32.mrb[0].mxu0
      %v662 = vadd.f32 %v591, %v661
      %v663 = vpop.f32.mrb[0].mxu0
      %v664 = vadd.f32 %v596, %v663
      %v665 = vpop.f32.mrb[0].mxu0
      %v666 = vadd.f32 %v596, %v665
      %667 = vmatprep.mubr.bf16.mxu0 0
      %668 = vmatmul.mubr.bf16.gmra.mrb[0].mxu0 %v623
      %v669 = vpop.f32.mrb[0].mxu0
      %v670 = vadd.f32 %v601, %v669
      %v671 = vpop.f32.mrb[0].mxu0
      %v672 = vadd.f32 %v601, %v671
      %v673 = vpop.f32.mrb[0].mxu0
      %v674 = vadd.f32 %v606, %v673
      %v675 = vpop.f32.mrb[0].mxu0
      %v676 = vadd.f32 %v606, %v675
      %677 = vdwg.mxu0
      %v678 = vmax.f32 %v660, 0.0
      %v679 = vmax.f32 %v662, 0.0
      %v680 = vmax.f32 %v664, 0.0
      %v681 = vmax.f32 %v666, 0.0
      %v682 = vmax.f32 %v670, 0.0
      %v683 = vmax.f32 %v672, 0.0
      %v684 = vmax.f32 %v674, 0.0
      %v685 = vmax.f32 %v676, 0.0
      %v686 = vld [vmem:[%s7] sm:$0x3]
      %v687 = vpack.c.bf16 %v680, %v678
      %v688 = vpack.c.bf16 %v681, %v679
      %v689 = vpack.c.bf16 %v684, %v682
      %v690 = vpack.c.bf16 %v685, %v683
      %v691 = vld [vmem:[%s8] sm:$0x7]
      %693 = vset.pattern.permute.xlu0 0
      %694 = vperm.xlu0 %693, %v691
      %v695 = vpop.permute.xlu0 %694
      %vm697 = vcmask 261120
      %v699 = vsel %vm697, %v686, 0
      %701 = vmatprep.subr.bf16.mxu0 %v688
      %702 = vmatpush1.bf16.msra.mxu0 %v687
      %703 = vmatprep.subr.bf16.mxu0 %v690
      %704 = vmatpush1.bf16.msra.mxu0 %v689
      %705 = vmatprep.subr.bf16.mxu0 0
      %706 = vmatpush1.bf16.msra.mxu0 0
      %707 = vmatprep.subr.bf16.mxu0 0
      %708 = vmatpush1.bf16.msra.mxu0 0
      %709 = vmatprep.subr.bf16.mxu0 0
      %710 = vmatpush1.bf16.msra.mxu0 0
      %711 = vmatprep.subr.bf16.mxu0 0
      %712 = vmatpush1.bf16.msra.mxu0 0
      %713 = vmatprep.subr.bf16.mxu0 0
      %714 = vmatpush1.bf16.msra.mxu0 0
      %715 = vmatprep.subr.bf16.mxu0 0
      %716 = vmatpush1.bf16.msra.mxu0 0
      %717 = vmatprep.subr.bf16.mxu0 0
      %718 = vmatpush1.bf16.msra.mxu0 0
      %719 = vmatprep.subr.bf16.mxu0 0
      %720 = vmatpush1.bf16.msra.mxu0 0
      %721 = vmatprep.subr.bf16.mxu0 0
      %722 = vmatpush1.bf16.msra.mxu0 0
      %723 = vmatprep.subr.bf16.mxu0 0
      %724 = vmatpush1.bf16.msra.mxu0 0
      %725 = vmatprep.subr.bf16.mxu0 0
      %726 = vmatpush1.bf16.msra.mxu0 0
      %727 = vmatprep.subr.bf16.mxu0 0
      %728 = vmatpush1.bf16.msra.mxu0 0
      %729 = vmatprep.subr.bf16.mxu0 0
      %730 = vmatpush1.bf16.msra.mxu0 0
      %731 = vmatprep.subr.bf16.mxu0 0
      %732 = vmatpush1.bf16.msra.mxu0 0
      %733 = vmatprep.mubr.bf16.mxu0 0
      %734 = vmatmul.mubr.bf16.gmra.mrb[0].mxu0 %v699
      %v735 = vpop.f32.mrb[0].mxu0
      %v736 = vadd.f32 %v695, %v735
      %v737 = vpop.f32.mrb[0].mxu0
      %v738 = vadd.f32 %v695, %v737
      %v739 = vpop.f32.mrb[0].mxu0
      %v740 = vpop.f32.mrb[0].mxu0
      %741 = vdwg.mxu0
      %v742 = vxor.u32 %v519, 2147483648
      %v743 = vmul.f32 %v742, 1.442695
      %v744 = vpow.pop %v743
      %v745 = vadd.f32 %v744, 1.0
      %v746 = vrcp.pop %v745
      %v747 = vmul.f32 1.0, %v746
      %v750 = vrot.slane %v514, 3
      %v751 = vrot.slane %v515, 3
      %v754 = vadd.f32 %v736, %v750
      %v755 = vadd.f32 %v738, %v751
      %v756 = vsub.f32 %v514, %v750
      %v757 = vsub.f32 %v515, %v751
      %v759 = vlaneseq
      %v760 = vshrl.u32 %v759, 7
      %v761 = vsub.s32 0, %v760
      %v762 = vrot.slane %v747, %v761
      %v763 = vlaneseq
      %v764 = vshrl.u32 %v763, 7
      %v765 = vsub.s32 1, %v764
      %v766 = vrot.slane %v747, %v765
      %v769 = vmul.f32 %v762, %v756
      %v770 = vmul.f32 %v766, %v757
      %v771 = vadd.f32 %v754, %v769
      %v772 = vadd.f32 %v755, %v770
      %v775 = vcombine.low %v771, %v772
      %777 = vst [vmem:[%s511] sm:$0x77] %v775
      %s778 = smul.u32 2, %s25
      %p779 = scmp.lt.s32.totalorder %s24, 1
      %s780 = scalar_select %p779, %s24, 1
      %p781 = scmp.lt.s32.totalorder %s778, 1
      %s782 = scalar_select %p781, %s778, 1
      %s783 = smul.addr %s780, 2
      %s784 = sadd.s32 %s782, %s783
      %s785 = smul.addr %s784, 4
      %s786 = scalar_lea.vmem %s9, %s785
      // Predicated region
      $region57: #{tpu_custom_call.1} parent=55 // pred_check
        %p787 = pneg %p276
      $region58: #{tpu_custom_call.1} parent=55 // pred_check_branch
        %789 = sbr.rel (%p787) target = $region60
      $region59: #{tpu_custom_call.1} parent=55 // pred_region
        %s790 = smul.u32 2, %s25
      $region60: #{tpu_custom_call.1} parent=55 // pred_fallthru
        _
    $region56: #{tpu_custom_call.1} parent=5 // pred_fallthru
      _
    %p791 = scmp.le.s32.totalorder 2, %s15
    // Predicated region
    $region61: #{tpu_custom_call.1} parent=5 // pred_check
      %p792 = pneg %p791
    $region62: #{tpu_custom_call.1} parent=5 // pred_check_branch
      %794 = sbr.rel (%p792) target = $region64
    $region63: #{tpu_custom_call.1} parent=5 // pred_region
      %s795 = ssub.s32 %s15, 2
      // Predicated region
      $region65: #{tpu_custom_call.1} parent=63 // pred_check
        %p796 = pneg %p282
      $region66: #{tpu_custom_call.1} parent=63 // pred_check_branch
        %798 = sbr.rel (%p796) target = $region68
      $region67: #{tpu_custom_call.1} parent=63 // pred_region
        %s799 = smul.u32 2, %s27
        %p800 = scmp.lt.s32.totalorder %s26, 1
        %s801 = scalar_select %p800, %s26, 1
        %p802 = scmp.lt.s32.totalorder %s799, 1
        %s803 = scalar_select %p802, %s799, 1
        %s804 = smul.addr %s801, 2
        %s805 = sadd.s32 %s803, %s804
        %s806 = smul.addr %s805, 4
        %s807 = scalar_lea.vmem %s9, %s806
      $region68: #{tpu_custom_call.1} parent=63 // pred_fallthru
        _
    $region64: #{tpu_custom_call.1} parent=5 // pred_fallthru
      _
  $region6: #{tpu_custom_call.1} parent=0 // loop_footer
    %s19 = sadd.s32 1, %s15
  $region7: #{tpu_custom_call.1} parent=0 // loop_footer_branch
    %14 = sbr.rel target = $region3
  $region8: #{tpu_custom_call.1} parent=0 // loop_exit
    _

</llo_original>
